<compile_context>
chip_gen: v5e
topology: v5e:2x2
jax: 0.10.0
libtpu: 0.0.40
codegen_flags: <defaults>
</compile_context>

<pallas_src>
import jax
import jax.numpy as jnp
from jax.experimental import pallas as pl
from jax.experimental.pallas import tpu as pltpu


_LANE = 512                      # lane-dense last dim (multiple of 128)
_BLOCK_BYTES = 2 * 1024 * 1024   # ~2 MiB per block; 2 bufs x (in + out) = 8 MiB


def _scale_kernel(scale_ref, x_ref, o_ref):
    # VPU elementwise multiply; scale lives in SMEM (scalar path, free).
    o_ref[...] = x_ref[...] * scale_ref[0].astype(x_ref.dtype)


def _sublane_multiple(dtype):
    # Dtype-aware sublane tiling: sub-32-bit dtypes pack along sublanes.
    itemsize = jnp.dtype(dtype).itemsize
    return {4: 8, 2: 16, 1: 32}.get(itemsize, 8)


def const_scale(x, scale):
    """Pallas equivalent of ConstScaleLayer(scale)(x) == x * scale."""
    orig_shape = x.shape
    dtype = x.dtype
    itemsize = jnp.dtype(dtype).itemsize
    n = x.size
    scale_arr = jnp.asarray([scale], dtype=jnp.float32)

    total_bytes = n * itemsize

    # ---- Case 1: whole tensor fits in one VMEM block (no grid, no pad) ----
    if total_bytes <= _BLOCK_BYTES:
        if n % 128 == 0:
            x_view = x.reshape(n // 128, 128)   # lane-dense view (free reshape)
        else:
            x_view = x                          # full-extent block, any shape
        out = pl.pallas_call(
            _scale_kernel,
            out_shape=jax.ShapeDtypeStruct(x_view.shape, dtype),
            in_specs=[
                pl.BlockSpec(memory_space=pltpu.MemorySpace.SMEM),
                pl.BlockSpec(memory_space=pltpu.MemorySpace.VMEM),
            ],
            out_specs=pl.BlockSpec(memory_space=pltpu.MemorySpace.VMEM),
        )(scale_arr, x_view)
        return out.reshape(orig_shape)

    # ---- Case 2: large tensor -> stream multi-MiB lane-dense tiles --------
    sub = _sublane_multiple(dtype)
    row_tile = max(sub, (_BLOCK_BYTES // (_LANE * itemsize)) // sub * sub)

    rows = pl.cdiv(n, _LANE)
    rows_padded = pl.cdiv(rows, row_tile) * row_tile
    pad = rows_padded * _LANE - n

    flat = x.reshape(-1)
    if pad:
        # TODO(synk): handle the ragged tail with an in-kernel masked store
        # instead of this extra pad/slice HBM pass (only hit when n is not a
        # multiple of row_tile * _LANE).
        flat = jnp.pad(flat, (0, pad))
    x2d = flat.reshape(rows_padded, _LANE)

    grid = (rows_padded // row_tile,)
    out2d = pl.pallas_call(
        _scale_kernel,
        out_shape=jax.ShapeDtypeStruct((rows_padded, _LANE), dtype),
        grid_spec=pltpu.PrefetchScalarGridSpec(
            num_scalar_prefetch=0,
            grid=grid,
            in_specs=[
                pl.BlockSpec(memory_space=pltpu.MemorySpace.SMEM),
                pl.BlockSpec((row_tile, _LANE), lambda i: (i, 0)),
            ],
            out_specs=pl.BlockSpec((row_tile, _LANE), lambda i: (i, 0)),
        ),
        compiler_params=pltpu.CompilerParams(
            dimension_semantics=("parallel",),
        ),
    )(scale_arr, x2d)

    out_flat = out2d.reshape(-1)
    if pad:
        out_flat = out_flat[:n]
    return out_flat.reshape(orig_shape)


class ConstScaleLayer:
    """JAX/Pallas mirror of gps_physics.utils.ptu.ConstScaleLayer."""

    def __init__(self, scale):
        self.scale = scale

    def __call__(self, x):
        return const_scale(x, self.scale)


if __name__ == "__main__":
    key = jax.random.PRNGKey(0)
    scale = 2.5

    # Small NCHW input (single-block path).
    x = jax.random.normal(key, (2, 4, 16, 16), dtype=jnp.float32)
    layer = ConstScaleLayer(scale)
    out = jax.block_until_ready(layer(x))
    ref = x * scale
    assert out.shape == x.shape
    assert out.dtype == x.dtype
    assert jnp.allclose(out, ref, atol=1e-6, rtol=1e-6)

    # Exercise the tiled streaming path (4 MiB tensor -> grid of 2 blocks).
    x2 = jax.random.normal(jax.random.PRNGKey(1), (8, 8, 128, 128),
                           dtype=jnp.float32)
    out2 = jax.block_until_ready(const_scale(x2, scale))
    assert jnp.allclose(out2, x2 * scale, atol=1e-6, rtol=1e-6)

    print("KERNEL_OK")
</pallas_src>

<mosaic_0001>
module attributes {stable_mosaic.version = 11 : i64} {
  func.func @_scale_kernel(%arg0: memref<1xf32, #tpu.memory_space<smem>>, %arg1: memref<16x128xf32, #tpu.memory_space<vmem>>, %arg2: memref<16x128xf32, #tpu.memory_space<vmem>>) attributes {dimension_semantics = [], scalar_prefetch = 0 : i64, scratch_operands = 0 : i64, tpu.core_type = #tpu.core_type<tc>} {
    %c0 = arith.constant 0 : index
    %c0_0 = arith.constant 0 : index
    %0 = vector.load %arg1[%c0, %c0_0] : memref<16x128xf32, #tpu.memory_space<vmem>>, vector<16x128xf32>
    %c0_1 = arith.constant 0 : index
    %1 = memref.load %arg0[%c0_1] : memref<1xf32, #tpu.memory_space<smem>>
    %2 = vector.broadcast %1 : f32 to vector<16x128xf32>
    %3 = arith.mulf %0, %2 : vector<16x128xf32>
    %c0_2 = arith.constant 0 : index
    %c0_3 = arith.constant 0 : index
    %4 = vector.load %arg2[%c0_2, %c0_3] : memref<16x128xf32, #tpu.memory_space<vmem>>, vector<16x128xf32>
    tpu.vector_store %arg2[%c0_2, %c0_3], %3 {strides = array<i32>} : memref<16x128xf32, #tpu.memory_space<vmem>>, vector<16x128xf32>,
    return
  }
}

</mosaic_0001>

<llo_original>
// kernel: tpu_custom_call.1
$region0: #{tpu_custom_call.1}
  #allocation0 [shape = 'u32[]', space=smem, size = 0x4, offset = 0x4, fixed_abs, tag = 'smem constant byte address 0x4 - core index']
  #allocation1 [shape = 'u32[72,128]{1,0:T(1,128)}', space=vmem, size = 0x9000, scoped, tag = 'internal scratch']
  #allocation2 [shape = 'f32[1]{0:T(128)S(6)}', space=smem, size = 0x200, scoped, tag = 'scoped memory for tpu_custom_call.1']
  %s0 = inlined_call_operand.<no memory space> [shape: f32[1], index: 0, kind: input, shape index: {}]
  %s1 = inlined_call_operand.hbm [shape: f32[16,128], index: 1, kind: input, shape index: {}]
  %s2 = inlined_call_operand.hbm [shape: f32[16,128], index: 2, kind: output, shape index: {}]
  %s3 = sld [smem:[#allocation0]]
  $region22: #{tpu_custom_call.1} parent=0
    _
  %s5 = ssub.s32 1, %s3
  %s6 = scalar_select 0, %s5, %s3
  %7 = sst [smem:[#allocation2]] %s0
  $region1: #{tpu_custom_call.1} parent=0
    #allocation3 [shape = 'u8[8192]{0}', space=vmem, size = 0x2000, scoped, tag = 'input window, operand 1, single buffered']
    #allocation4 [shape = 's32[1]{0}', space=sflag, size = 0x4, scoped, tag = 'scoped memory for tpu_custom_call.1']
    #allocation5 [shape = 's32[1]{0}', space=sflag, size = 0x4, scoped, tag = 'scoped memory for tpu_custom_call.1']
    #allocation6 [shape = 'u8[8192]{0}', space=vmem, size = 0x2000, scoped, tag = 'output window, operand 0, single buffered']
    %8 = vsyncpa [#allocation4], 0
    %9 = vsyncpa [#allocation5], 0
    // Predicated region
    $region2: #{tpu_custom_call.1} parent=1 // pred_check
      _
    $region3: #{tpu_custom_call.1} parent=1 // pred_check_branch
      %11 = sbr.rel (0) target = $region5
    $region4: #{tpu_custom_call.1} parent=1 // pred_region
      _
    $region5: #{tpu_custom_call.1} parent=1 // pred_fallthru
      _
    // Predicated region
    $region6: #{tpu_custom_call.1} parent=1 // pred_check
      _
    $region7: #{tpu_custom_call.1} parent=1 // pred_check_branch
      %13 = sbr.rel (0) target = $region9
    $region8: #{tpu_custom_call.1} parent=1 // pred_region
      %15 = vsyncadd [#allocation4], 0
      %s16 = sshll.u32 %s1, 4
      %s17 = int_to_ptr.hbm [resolvable:$true] %s16
      %s18 = sshll.u32 [#allocation3], 4
      %s19 = int_to_ptr.vmem [resolvable:$true] %s18
      %24 = dma.hbm_to_vmem [thread:$0]  %s17, 256, %s19, [#allocation4], 128, 128, 8
    $region9: #{tpu_custom_call.1} parent=1 // pred_fallthru
      _
    // Predicated region
    $region10: #{tpu_custom_call.1} parent=1 // pred_check
      _
    $region11: #{tpu_custom_call.1} parent=1 // pred_check_branch
      %26 = sbr.rel (0) target = $region13
    $region12: #{tpu_custom_call.1} parent=1 // pred_region
      %28 = dma.done [#allocation4], 256
    $region13: #{tpu_custom_call.1} parent=1 // pred_fallthru
      _
    %v29 = vld [vmem:[#allocation3] sm:$0xff]
    %v30 = vld [vmem:[#allocation3 + $0x8] sm:$0xff]
    %s31 = sld [smem:[#allocation2]]
    %v32 = vstv %s31
    %v33 = vmul.f32 %v29, %v32
    %v34 = vmul.f32 %v30, %v32
    %35 = vst [vmem:[#allocation6] sm:$0xff] %v33
    %36 = vst [vmem:[#allocation6 + $0x8] sm:$0xff] %v34
    // Predicated region
    $region14: #{tpu_custom_call.1} parent=1 // pred_check
      _
    $region15: #{tpu_custom_call.1} parent=1 // pred_check_branch
      %38 = sbr.rel (0) target = $region17
    $region16: #{tpu_custom_call.1} parent=1 // pred_region
      %40 = vsyncadd [#allocation5], 0
      %s41 = sshll.u32 [#allocation6], 4
      %s42 = int_to_ptr.vmem [resolvable:$true] %s41
      %s43 = sshll.u32 %s2, 4
      %s44 = int_to_ptr.hbm [resolvable:$true] %s43
      %49 = dma.vmem_to_hbm [thread:$0]  %s42, 256, %s44, [#allocation5], 128, 128, 8
    $region17: #{tpu_custom_call.1} parent=1 // pred_fallthru
      _
    // Predicated region
    $region18: #{tpu_custom_call.1} parent=1 // pred_check
      _
    $region19: #{tpu_custom_call.1} parent=1 // pred_check_branch
      %51 = sbr.rel (0) target = $region21
    $region20: #{tpu_custom_call.1} parent=1 // pred_region
      %53 = dma.done [#allocation5], 256
    $region21: #{tpu_custom_call.1} parent=1 // pred_fallthru
      _
    %54 = vsyncpa [#allocation4], 1
    %55 = vsyncpa [#allocation5], 1

</llo_original>
